<compile_context>
chip_gen: v7x
topology: tpu7x:2x2x1
jax: 0.10.0
libtpu: 0.0.40
codegen_flags: <defaults>
</compile_context>

<pallas_src>
import jax
import jax.numpy as jnp
from jax.experimental import pallas as pl
from jax.experimental.pallas import tpu as pltpu

H1 = 128   # nn.Linear(state_dim, 128)
H2 = 64    # nn.Linear(128, 64)


def _round_up(x: int, m: int) -> int:
    return ((x + m - 1) // m) * m


def _cdiv(a: int, b: int) -> int:
    return -(-a // b)


def mlp_kernel(xt_ref, w1t_ref, b1t_ref, w2t_ref, b2t_ref, w3t_ref, b3t_ref, out_ref):
    xt = xt_ref[...]                                                   # (sdim_pad, TM) bf16

    # Layer 1: (128, sdim_pad) @ (sdim_pad, TM) -> (128, TM); f32 accumulate + bias + ReLU.
    h1 = jnp.dot(w1t_ref[...], xt, preferred_element_type=jnp.float32) + b1t_ref[...]
    h1 = jnp.maximum(h1, 0.0).astype(jnp.bfloat16)

    # Layer 2: (64, 128) @ (128, TM) -> (64, TM); f32 accumulate + bias + ReLU.
    h2 = jnp.dot(w2t_ref[...], h1, preferred_element_type=jnp.float32) + b2t_ref[...]
    h2 = jnp.maximum(h2, 0.0).astype(jnp.bfloat16)

    # Layer 3 (Q-values, no activation): (8, 64) @ (64, TM) -> (8, TM) f32, lane-dense store.
    out_ref[...] = jnp.dot(w3t_ref[...], h2, preferred_element_type=jnp.float32) + b3t_ref[...]


def net_forward(state, params, *, tm_max=1024):
    """state: (B, state_dim) float. params: dict from init_params. Returns (B, action_dim) f32."""
    w1t, b1t = params["w1t"], params["b1t"]
    w2t, b2t = params["w2t"], params["b2t"]
    w3t, b3t = params["w3t"], params["b3t"]
    action_dim = params["action_dim"]
    out_rows = params["out_rows"]
    sdim_pad = params["sdim_pad"]

    B, state_dim = state.shape

    # Tile policy: >=2 lane-tiles once the batch is big enough (v7x megacore), tiles up to 1024
    # lanes to amortize per-grid-step overhead, always a multiple of 128 so every input/output
    # block is lane-dense (unmasked vst).  Padding waste is <=127 rows of ~48 B each.
    n_tiles = 1 if B <= 256 else max(2, _cdiv(B, tm_max))
    tm_eff = _round_up(max(_cdiv(B, n_tiles), 1), 128)
    b_pad = n_tiles * tm_eff

    # Feature-major input: (sdim_pad, b_pad) bf16.  Pad/transpose/cast fuse into one tiny XLA pass;
    # padded rows/cols are exact zeros so the Q-values are unchanged.
    xt = jnp.pad(state, ((0, b_pad - B), (0, sdim_pad - state_dim))).T.astype(jnp.bfloat16)

    flops = 2 * b_pad * (sdim_pad * H1 + H1 * H2 + H2 * out_rows)
    bytes_accessed = (
        xt.size * xt.dtype.itemsize
        + sum(int(p.size) * p.dtype.itemsize for p in (w1t, b1t, w2t, b2t, w3t, b3t))
        + out_rows * b_pad * 4
    )

    qt = pl.pallas_call(
        mlp_kernel,
        out_shape=jax.ShapeDtypeStruct((out_rows, b_pad), jnp.float32),
        grid=(n_tiles,),
        in_specs=[
            pl.BlockSpec((sdim_pad, tm_eff), lambda i: (0, i)),   # batch tiled along lanes
            pl.BlockSpec(w1t.shape, lambda i: (0, 0)),            # weights stay VMEM-resident
            pl.BlockSpec(b1t.shape, lambda i: (0, 0)),
            pl.BlockSpec(w2t.shape, lambda i: (0, 0)),
            pl.BlockSpec(b2t.shape, lambda i: (0, 0)),
            pl.BlockSpec(w3t.shape, lambda i: (0, 0)),
            pl.BlockSpec(b3t.shape, lambda i: (0, 0)),
        ],
        out_specs=pl.BlockSpec((out_rows, tm_eff), lambda i: (0, i)),
        compiler_params=pltpu.CompilerParams(
            dimension_semantics=("parallel",),                    # megacore sharding on v7x
        ),
        cost_estimate=pl.CostEstimate(
            flops=flops, transcendentals=0, bytes_accessed=bytes_accessed
        ),
    )(xt, w1t, b1t, w2t, b2t, w3t, b3t)

    # Tiny (action_dim, B) slice + transpose back to the PyTorch (B, action_dim) convention.
    return qt[:action_dim, :B].T


def init_params(key, state_dim, action_dim, dtype=jnp.bfloat16):
    """PyTorch-like uniform fan-in init; weights transposed / zero-padded / cast once."""
    ks = jax.random.split(key, 6)
    sdim_pad = _round_up(state_dim, 16)     # bf16 sublane packing for the layer-1 contraction
    out_rows = _round_up(action_dim, 8)     # action-major output: actions on sublanes

    def lin(kw, kb, fan_in, fan_out):
        bound = float(fan_in) ** -0.5
        w = jax.random.uniform(kw, (fan_in, fan_out), jnp.float32, -bound, bound)
        b = jax.random.uniform(kb, (fan_out,), jnp.float32, -bound, bound)
        return w, b

    w1, b1 = lin(ks[0], ks[1], state_dim, H1)      # (state_dim, 128)
    w2, b2 = lin(ks[2], ks[3], H1, H2)             # (128, 64)
    w3, b3 = lin(ks[4], ks[5], H2, action_dim)     # (64, action_dim)

    # Transposed ("feature-major") parameters; all padding is exact zeros.
    w1t = jnp.zeros((H1, sdim_pad), jnp.float32).at[:, :state_dim].set(w1.T)
    w2t = w2.T                                                            # (64, 128)
    w3t = jnp.zeros((out_rows, H2), jnp.float32).at[:action_dim, :].set(w3.T)
    b1t = b1.reshape(H1, 1)
    b2t = b2.reshape(H2, 1)
    b3t = jnp.zeros((out_rows, 1), jnp.float32).at[:action_dim, 0].set(b3)

    return {
        "w1t": w1t.astype(dtype), "b1t": b1t,    # biases stay f32 (f32 epilogue, v5e-safe)
        "w2t": w2t.astype(dtype), "b2t": b2t,
        "w3t": w3t.astype(dtype), "b3t": b3t,
        "state_dim": state_dim, "sdim_pad": sdim_pad,
        "action_dim": action_dim, "out_rows": out_rows,
    }


def net_forward_ref(state, p):
    """Pure-JAX reference using the same bf16 weights / f32 accumulation (transposed layout)."""
    xt = jnp.pad(state, ((0, 0), (0, p["sdim_pad"] - state.shape[1]))).T.astype(jnp.bfloat16)
    h1 = jnp.maximum(jnp.dot(p["w1t"], xt, preferred_element_type=jnp.float32) + p["b1t"], 0.0)
    h2 = jnp.maximum(
        jnp.dot(p["w2t"], h1.astype(jnp.bfloat16), preferred_element_type=jnp.float32) + p["b2t"],
        0.0,
    )
    q = jnp.dot(p["w3t"], h2.astype(jnp.bfloat16), preferred_element_type=jnp.float32) + p["b3t"]
    return q[: p["action_dim"], :].T


if __name__ == "__main__":
    key = jax.random.PRNGKey(0)
    k_param, k_state, k_state2 = jax.random.split(key, 3)

    state_dim = 8      # LunarLander-like small observation
    action_dim = 4
    batch = 2

    params = init_params(k_param, state_dim, action_dim)

    # Small-batch check (single tile, grid=(1,)).
    state = jax.random.normal(k_state, (batch, state_dim), jnp.float32)
    q = jax.block_until_ready(net_forward(state, params))
    q_ref = net_forward_ref(state, params)
    assert q.shape == (batch, action_dim)
    assert jnp.allclose(q, q_ref, atol=1e-2, rtol=1e-2), "mismatch vs reference (small batch)"

    # Larger-batch check exercising padding + the 2-tile parallel grid (B=300 -> 2 tiles of 256).
    state_big = jax.random.normal(k_state2, (300, state_dim), jnp.float32)
    q_big = jax.block_until_ready(net_forward(state_big, params))
    q_big_ref = net_forward_ref(state_big, params)
    assert q_big.shape == (300, action_dim)
    assert jnp.allclose(q_big, q_big_ref, atol=1e-2, rtol=1e-2), "mismatch vs reference (big batch)"

    print("KERNEL_OK")
</pallas_src>

<mosaic_0001>
module attributes {stable_mosaic.version = 11 : i64} {
  func.func @mlp_kernel(%arg0: i32, %arg1: memref<16x128xbf16, #tpu.memory_space<vmem>>, %arg2: memref<128x16xbf16, #tpu.memory_space<vmem>>, %arg3: memref<128x1xf32, #tpu.memory_space<vmem>>, %arg4: memref<64x128xbf16, #tpu.memory_space<vmem>>, %arg5: memref<64x1xf32, #tpu.memory_space<vmem>>, %arg6: memref<8x64xbf16, #tpu.memory_space<vmem>>, %arg7: memref<8x1xf32, #tpu.memory_space<vmem>>, %arg8: memref<8x128xf32, #tpu.memory_space<vmem>>) attributes {dimension_semantics = [#tpu.dimension_semantics<parallel>], iteration_bounds = array<i64: 1>, scalar_prefetch = 0 : i64, scratch_operands = 0 : i64, tpu.core_type = #tpu.core_type<tc>, window_params = [{transform_indices = @transform_0, window_bounds = array<i64: 16, 128>}, {pipeline_mode = #tpu.pipeline_mode<synchronous>, transform_indices = @transform_1, window_bounds = array<i64: 128, 16>}, {pipeline_mode = #tpu.pipeline_mode<synchronous>, transform_indices = @transform_2, window_bounds = array<i64: 128, 1>}, {pipeline_mode = #tpu.pipeline_mode<synchronous>, transform_indices = @transform_3, window_bounds = array<i64: 64, 128>}, {pipeline_mode = #tpu.pipeline_mode<synchronous>, transform_indices = @transform_4, window_bounds = array<i64: 64, 1>}, {pipeline_mode = #tpu.pipeline_mode<synchronous>, transform_indices = @transform_5, window_bounds = array<i64: 8, 64>}, {pipeline_mode = #tpu.pipeline_mode<synchronous>, transform_indices = @transform_6, window_bounds = array<i64: 8, 1>}, {transform_indices = @transform_7, window_bounds = array<i64: 8, 128>}]} {
    %c0 = arith.constant 0 : index
    %c0_0 = arith.constant 0 : index
    %0 = vector.load %arg1[%c0, %c0_0] : memref<16x128xbf16, #tpu.memory_space<vmem>>, vector<16x128xbf16>
    %c0_1 = arith.constant 0 : index
    %c0_2 = arith.constant 0 : index
    %1 = vector.load %arg2[%c0_1, %c0_2] : memref<128x16xbf16, #tpu.memory_space<vmem>>, vector<128x16xbf16>
    %cst = arith.constant dense<0.000000e+00> : vector<128x128xf32>
    %2 = tpu.matmul %1, %0, %cst {dimension_numbers = #tpu.dot_dimension_numbers<[1], [0], [0], [1], [0, 0, 1, 1], [], []>} : vector<128x16xbf16>, vector<16x128xbf16>, vector<128x128xf32> -> vector<128x128xf32>
    %c0_3 = arith.constant 0 : index
    %c0_4 = arith.constant 0 : index
    %3 = vector.load %arg3[%c0_3, %c0_4] : memref<128x1xf32, #tpu.memory_space<vmem>>, vector<128x1xf32>
    %4 = vector.broadcast %3 : vector<128x1xf32> to vector<128x128xf32>
    %5 = arith.addf %2, %4 : vector<128x128xf32>
    %cst_5 = arith.constant 0.000000e+00 : f32
    %6 = vector.broadcast %cst_5 : f32 to vector<128x128xf32>
    %7 = arith.maximumf %5, %6 : vector<128x128xf32>
    %8 = arith.truncf %7 : vector<128x128xf32> to vector<128x128xbf16>
    %c0_6 = arith.constant 0 : index
    %c0_7 = arith.constant 0 : index
    %9 = vector.load %arg4[%c0_6, %c0_7] : memref<64x128xbf16, #tpu.memory_space<vmem>>, vector<64x128xbf16>
    %cst_8 = arith.constant dense<0.000000e+00> : vector<64x128xf32>
    %10 = tpu.matmul %9, %8, %cst_8 {dimension_numbers = #tpu.dot_dimension_numbers<[1], [0], [0], [1], [0, 0, 1, 1], [], []>} : vector<64x128xbf16>, vector<128x128xbf16>, vector<64x128xf32> -> vector<64x128xf32>
    %c0_9 = arith.constant 0 : index
    %c0_10 = arith.constant 0 : index
    %11 = vector.load %arg5[%c0_9, %c0_10] : memref<64x1xf32, #tpu.memory_space<vmem>>, vector<64x1xf32>
    %12 = vector.broadcast %11 : vector<64x1xf32> to vector<64x128xf32>
    %13 = arith.addf %10, %12 : vector<64x128xf32>
    %cst_11 = arith.constant 0.000000e+00 : f32
    %14 = vector.broadcast %cst_11 : f32 to vector<64x128xf32>
    %15 = arith.maximumf %13, %14 : vector<64x128xf32>
    %16 = arith.truncf %15 : vector<64x128xf32> to vector<64x128xbf16>
    %c0_12 = arith.constant 0 : index
    %c0_13 = arith.constant 0 : index
    %17 = vector.load %arg6[%c0_12, %c0_13] : memref<8x64xbf16, #tpu.memory_space<vmem>>, vector<8x64xbf16>
    %cst_14 = arith.constant dense<0.000000e+00> : vector<8x128xf32>
    %18 = tpu.matmul %17, %16, %cst_14 {dimension_numbers = #tpu.dot_dimension_numbers<[1], [0], [0], [1], [0, 0, 1, 1], [], []>} : vector<8x64xbf16>, vector<64x128xbf16>, vector<8x128xf32> -> vector<8x128xf32>
    %c0_15 = arith.constant 0 : index
    %c0_16 = arith.constant 0 : index
    %19 = vector.load %arg7[%c0_15, %c0_16] : memref<8x1xf32, #tpu.memory_space<vmem>>, vector<8x1xf32>
    %20 = vector.broadcast %19 : vector<8x1xf32> to vector<8x128xf32>
    %21 = arith.addf %18, %20 : vector<8x128xf32>
    %c0_17 = arith.constant 0 : index
    %c0_18 = arith.constant 0 : index
    %22 = vector.load %arg8[%c0_17, %c0_18] : memref<8x128xf32, #tpu.memory_space<vmem>>, vector<8x128xf32>
    tpu.vector_store %arg8[%c0_17, %c0_18], %21 {strides = array<i32>} : memref<8x128xf32, #tpu.memory_space<vmem>>, vector<8x128xf32>,
    return
  }
  func.func @transform_0(%arg0: i32) -> (i32, i32) {
    %c0_i32 = arith.constant 0 : i32
    %c0_i32_0 = arith.constant 0 : i32
    return %c0_i32, %arg0 : i32, i32
  }
  func.func @transform_1(%arg0: i32) -> (i32, i32) {
    %c0_i32 = arith.constant 0 : i32
    %c0_i32_0 = arith.constant 0 : i32
    %c0_i32_1 = arith.constant 0 : i32
    return %c0_i32, %c0_i32_0 : i32, i32
  }
  func.func @transform_2(%arg0: i32) -> (i32, i32) {
    %c0_i32 = arith.constant 0 : i32
    %c0_i32_0 = arith.constant 0 : i32
    %c0_i32_1 = arith.constant 0 : i32
    return %c0_i32, %c0_i32_0 : i32, i32
  }
  func.func @transform_3(%arg0: i32) -> (i32, i32) {
    %c0_i32 = arith.constant 0 : i32
    %c0_i32_0 = arith.constant 0 : i32
    %c0_i32_1 = arith.constant 0 : i32
    return %c0_i32, %c0_i32_0 : i32, i32
  }
  func.func @transform_4(%arg0: i32) -> (i32, i32) {
    %c0_i32 = arith.constant 0 : i32
    %c0_i32_0 = arith.constant 0 : i32
    %c0_i32_1 = arith.constant 0 : i32
    return %c0_i32, %c0_i32_0 : i32, i32
  }
  func.func @transform_5(%arg0: i32) -> (i32, i32) {
    %c0_i32 = arith.constant 0 : i32
    %c0_i32_0 = arith.constant 0 : i32
    %c0_i32_1 = arith.constant 0 : i32
    return %c0_i32, %c0_i32_0 : i32, i32
  }
  func.func @transform_6(%arg0: i32) -> (i32, i32) {
    %c0_i32 = arith.constant 0 : i32
    %c0_i32_0 = arith.constant 0 : i32
    %c0_i32_1 = arith.constant 0 : i32
    return %c0_i32, %c0_i32_0 : i32, i32
  }
  func.func @transform_7(%arg0: i32) -> (i32, i32) {
    %c0_i32 = arith.constant 0 : i32
    %c0_i32_0 = arith.constant 0 : i32
    return %c0_i32, %arg0 : i32, i32
  }
}

</mosaic_0001>

<llo_original>
// kernel: tpu_custom_call.1
$region0: #{tpu_custom_call.1}
  #allocation0 [shape = 'u32[]', space=smem, size = 0x4, offset = 0x4, fixed_abs, tag = 'smem constant byte address 0x4 - core index']
  #allocation1 [shape = 'u32[144,128]{1,0:T(1,128)}', space=vmem, size = 0x12000, scoped, tag = 'internal scratch']
  %s0 = inlined_call_operand.vmem [shape: bf16[16,128], index: 0, kind: input, shape index: {}]
  %s1 = inlined_call_operand.vmem [shape: bf16[128,16], index: 1, kind: input, shape index: {}]
  %s2 = inlined_call_operand.vmem [shape: f32[128,1], index: 2, kind: input, shape index: {}]
  %s3 = inlined_call_operand.vmem [shape: bf16[64,128], index: 3, kind: input, shape index: {}]
  %s4 = inlined_call_operand.vmem [shape: f32[64,1], index: 4, kind: input, shape index: {}]
  %s5 = inlined_call_operand.vmem [shape: bf16[8,64], index: 5, kind: input, shape index: {}]
  %s6 = inlined_call_operand.vmem [shape: f32[8,1], index: 6, kind: input, shape index: {}]
  %s7 = inlined_call_operand.hbm [shape: f32[8,128], index: 7, kind: output, shape index: {}]
  %s8 = sld [smem:[#allocation0]]
  $region38: #{tpu_custom_call.1} parent=0
    _
  %s10 = ssub.s32 1, %s8
  %s11 = scalar_select 0, %s10, %s8
  $region1: #{tpu_custom_call.1} parent=0
    #allocation2 [shape = 'u8[4096]{0}', space=vmem, size = 0x1000, scoped, tag = 'output window, operand 0, single buffered']
    #allocation3 [shape = 's32[1]{0}', space=sflag, size = 0x4, scoped, tag = 'scoped memory for tpu_custom_call.1']
    %12 = vsyncpa [#allocation3], 0
    // Predicated region
    $region2: #{tpu_custom_call.1} parent=1 // pred_check
      _
    $region3: #{tpu_custom_call.1} parent=1 // pred_check_branch
      %14 = sbr.rel (0) target = $region5
    $region4: #{tpu_custom_call.1} parent=1 // pred_region
      _
    $region5: #{tpu_custom_call.1} parent=1 // pred_fallthru
      _
    // Predicated region
    $region6: #{tpu_custom_call.1} parent=1 // pred_check
      _
    $region7: #{tpu_custom_call.1} parent=1 // pred_check_branch
      %16 = sbr.rel (0) target = $region9
    $region8: #{tpu_custom_call.1} parent=1 // pred_region
      _
    $region9: #{tpu_custom_call.1} parent=1 // pred_fallthru
      _
    // Predicated region
    $region10: #{tpu_custom_call.1} parent=1 // pred_check
      _
    $region11: #{tpu_custom_call.1} parent=1 // pred_check_branch
      %18 = sbr.rel (0) target = $region13
    $region12: #{tpu_custom_call.1} parent=1 // pred_region
      _
    $region13: #{tpu_custom_call.1} parent=1 // pred_fallthru
      _
    // Predicated region
    $region14: #{tpu_custom_call.1} parent=1 // pred_check
      _
    $region15: #{tpu_custom_call.1} parent=1 // pred_check_branch
      %20 = sbr.rel (0) target = $region17
    $region16: #{tpu_custom_call.1} parent=1 // pred_region
      _
    $region17: #{tpu_custom_call.1} parent=1 // pred_fallthru
      _
    // Predicated region
    $region18: #{tpu_custom_call.1} parent=1 // pred_check
      _
    $region19: #{tpu_custom_call.1} parent=1 // pred_check_branch
      %22 = sbr.rel (0) target = $region21
    $region20: #{tpu_custom_call.1} parent=1 // pred_region
      _
    $region21: #{tpu_custom_call.1} parent=1 // pred_fallthru
      _
    // Predicated region
    $region22: #{tpu_custom_call.1} parent=1 // pred_check
      _
    $region23: #{tpu_custom_call.1} parent=1 // pred_check_branch
      %24 = sbr.rel (0) target = $region25
    $region24: #{tpu_custom_call.1} parent=1 // pred_region
      _
    $region25: #{tpu_custom_call.1} parent=1 // pred_fallthru
      _
    // Predicated region
    $region26: #{tpu_custom_call.1} parent=1 // pred_check
      _
    $region27: #{tpu_custom_call.1} parent=1 // pred_check_branch
      %26 = sbr.rel (0) target = $region29
    $region28: #{tpu_custom_call.1} parent=1 // pred_region
      _
    $region29: #{tpu_custom_call.1} parent=1 // pred_fallthru
      _
    %v28 = vld [vmem:[%s0] sm:$0xf]
    %v29 = vld [vmem:[%s0 + $0x4] sm:$0xf]
    %v30 = vld [vmem:[%s1] sm:$0xf]
    %v31 = vld [vmem:[%s1 + $0x4] sm:$0xf]
    %v32 = vld [vmem:[%s1 + $0x8] sm:$0xf]
    %v33 = vld [vmem:[%s1 + $0xc] sm:$0xf]
    %v34 = vld [vmem:[%s1 + $0x10] sm:$0xf]
    %v35 = vld [vmem:[%s1 + $0x14] sm:$0xf]
    %v36 = vld [vmem:[%s1 + $0x18] sm:$0xf]
    %v37 = vld [vmem:[%s1 + $0x1c] sm:$0xf]
    %v38 = vld [vmem:[%s1 + $0x20] sm:$0xf]
    %v39 = vld [vmem:[%s1 + $0x24] sm:$0xf]
    %v40 = vld [vmem:[%s1 + $0x28] sm:$0xf]
    %v41 = vld [vmem:[%s1 + $0x2c] sm:$0xf]
    %v42 = vld [vmem:[%s1 + $0x30] sm:$0xf]
    %v43 = vld [vmem:[%s1 + $0x34] sm:$0xf]
    %v44 = vld [vmem:[%s1 + $0x38] sm:$0xf]
    %v45 = vld [vmem:[%s1 + $0x3c] sm:$0xf]
    %v46 = vld [vmem:[%s2] sm:$0xff]
    %v47 = vld [vmem:[%s2 + $0x8] sm:$0xff]
    %v48 = vld [vmem:[%s2 + $0x10] sm:$0xff]
    %v49 = vld [vmem:[%s2 + $0x18] sm:$0xff]
    %v50 = vld [vmem:[%s2 + $0x20] sm:$0xff]
    %v51 = vld [vmem:[%s2 + $0x28] sm:$0xff]
    %v52 = vld [vmem:[%s2 + $0x30] sm:$0xff]
    %v53 = vld [vmem:[%s2 + $0x38] sm:$0xff]
    %v54 = vld [vmem:[%s2 + $0x40] sm:$0xff]
    %v55 = vld [vmem:[%s2 + $0x48] sm:$0xff]
    %v56 = vld [vmem:[%s2 + $0x50] sm:$0xff]
    %v57 = vld [vmem:[%s2 + $0x58] sm:$0xff]
    %v58 = vld [vmem:[%s2 + $0x60] sm:$0xff]
    %v59 = vld [vmem:[%s2 + $0x68] sm:$0xff]
    %v60 = vld [vmem:[%s2 + $0x70] sm:$0xff]
    %v61 = vld [vmem:[%s2 + $0x78] sm:$0xff]
    %63 = vset.pattern.permute.xlu0 0
    %64 = vperm.xlu0 %63, %v46
    %v65 = vpop.permute.xlu0 %64
    %68 = vset.pattern.permute.xlu0 0
    %69 = vperm.xlu0 %68, %v47
    %v70 = vpop.permute.xlu0 %69
    %73 = vset.pattern.permute.xlu0 0
    %74 = vperm.xlu0 %73, %v48
    %v75 = vpop.permute.xlu0 %74
    %78 = vset.pattern.permute.xlu0 0
    %79 = vperm.xlu0 %78, %v49
    %v80 = vpop.permute.xlu0 %79
    %83 = vset.pattern.permute.xlu0 0
    %84 = vperm.xlu0 %83, %v50
    %v85 = vpop.permute.xlu0 %84
    %88 = vset.pattern.permute.xlu0 0
    %89 = vperm.xlu0 %88, %v51
    %v90 = vpop.permute.xlu0 %89
    %93 = vset.pattern.permute.xlu0 0
    %94 = vperm.xlu0 %93, %v52
    %v95 = vpop.permute.xlu0 %94
    %98 = vset.pattern.permute.xlu0 0
    %99 = vperm.xlu0 %98, %v53
    %v100 = vpop.permute.xlu0 %99
    %103 = vset.pattern.permute.xlu0 0
    %104 = vperm.xlu0 %103, %v54
    %v105 = vpop.permute.xlu0 %104
    %108 = vset.pattern.permute.xlu0 0
    %109 = vperm.xlu0 %108, %v55
    %v110 = vpop.permute.xlu0 %109
    %113 = vset.pattern.permute.xlu0 0
    %114 = vperm.xlu0 %113, %v56
    %v115 = vpop.permute.xlu0 %114
    %118 = vset.pattern.permute.xlu0 0
    %119 = vperm.xlu0 %118, %v57
    %v120 = vpop.permute.xlu0 %119
    %123 = vset.pattern.permute.xlu0 0
    %124 = vperm.xlu0 %123, %v58
    %v125 = vpop.permute.xlu0 %124
    %128 = vset.pattern.permute.xlu0 0
    %129 = vperm.xlu0 %128, %v59
    %v130 = vpop.permute.xlu0 %129
    %133 = vset.pattern.permute.xlu0 0
    %134 = vperm.xlu0 %133, %v60
    %v135 = vpop.permute.xlu0 %134
    %138 = vset.pattern.permute.xlu0 0
    %139 = vperm.xlu0 %138, %v61
    %v140 = vpop.permute.xlu0 %139
    %v158 = vunpack.c.l.b16 %v30
    %v159 = vunpack.c.l.b16 %v31
    %v160 = vunpack.c.l.b16 %v32
    %v161 = vunpack.c.l.b16 %v33
    %v162 = vunpack.c.l.b16 %v34
    %v163 = vunpack.c.l.b16 %v35
    %v164 = vunpack.c.l.b16 %v36
    %v165 = vunpack.c.l.b16 %v37
    %v166 = vunpack.c.l.b16 %v38
    %v167 = vunpack.c.l.b16 %v39
    %v168 = vunpack.c.l.b16 %v40
    %v169 = vunpack.c.l.b16 %v41
    %v170 = vunpack.c.l.b16 %v42
    %v171 = vunpack.c.l.b16 %v43
    %v172 = vunpack.c.l.b16 %v44
    %v173 = vunpack.c.l.b16 %v45
    %v174 = vpack.c.b16 %v159, %v158
    %v175 = vpack.c.b16 %v161, %v160
    %v176 = vpack.c.b16 %v163, %v162
    %v177 = vpack.c.b16 %v165, %v164
    %v178 = vpack.c.b16 %v167, %v166
    %v179 = vpack.c.b16 %v169, %v168
    %v180 = vpack.c.b16 %v171, %v170
    %v181 = vpack.c.b16 %v173, %v172
    %v184 = vunpack.c.l.b16 %v28
    %v185 = vunpack.c.l.b16 %v29
    %v186 = vpack.c.b16 %v185, %v184
    %vm188 = vcmask 130048
    %v190 = vsel %vm188, %v174, 0
    %v193 = vsel %vm188, %v175, 0
    %v196 = vsel %vm188, %v176, 0
    %v199 = vsel %vm188, %v177, 0
    %v202 = vsel %vm188, %v178, 0
    %v205 = vsel %vm188, %v179, 0
    %v208 = vsel %vm188, %v180, 0
    %v211 = vsel %vm188, %v181, 0
    %213 = vmatprep.subr.bf16.mxu0 0
    %214 = vmatpush1.bf16.msra.mxu0 %v186
    %215 = vmatprep.subr.bf16.mxu0 0
    %216 = vmatpush1.bf16.msra.mxu0 0
    %217 = vmatprep.subr.bf16.mxu0 0
    %218 = vmatpush1.bf16.msra.mxu0 0
    %219 = vmatprep.subr.bf16.mxu0 0
    %220 = vmatpush1.bf16.msra.mxu0 0
    %221 = vmatprep.subr.bf16.mxu0 0
    %222 = vmatpush1.bf16.msra.mxu0 0
    %223 = vmatprep.subr.bf16.mxu0 0
    %224 = vmatpush1.bf16.msra.mxu0 0
    %225 = vmatprep.subr.bf16.mxu0 0
    %226 = vmatpush1.bf16.msra.mxu0 0
    %227 = vmatprep.subr.bf16.mxu0 0
    %228 = vmatpush1.bf16.msra.mxu0 0
    %229 = vmatprep.subr.bf16.mxu0 0
    %230 = vmatpush1.bf16.msra.mxu0 0
    %231 = vmatprep.subr.bf16.mxu0 0
    %232 = vmatpush1.bf16.msra.mxu0 0
    %233 = vmatprep.subr.bf16.mxu0 0
    %234 = vmatpush1.bf16.msra.mxu0 0
    %235 = vmatprep.subr.bf16.mxu0 0
    %236 = vmatpush1.bf16.msra.mxu0 0
    %237 = vmatprep.subr.bf16.mxu0 0
    %238 = vmatpush1.bf16.msra.mxu0 0
    %239 = vmatprep.subr.bf16.mxu0 0
    %240 = vmatpush1.bf16.msra.mxu0 0
    %241 = vmatprep.subr.bf16.mxu0 0
    %242 = vmatpush1.bf16.msra.mxu0 0
    %243 = vmatprep.subr.bf16.mxu0 0
    %244 = vmatpush1.bf16.msra.mxu0 0
    %245 = vmatprep.mubr.bf16.mxu0 0
    %246 = vmatmul.mubr.bf16.gmra.mrb[0].mxu0 %v190
    %v247 = vpop.f32.mrb[0].mxu0
    %v248 = vadd.f32 %v65, %v247
    %v249 = vpop.f32.mrb[0].mxu0
    %v250 = vpop.f32.mrb[0].mxu0
    %v251 = vadd.f32 %v70, %v250
    %v252 = vpop.f32.mrb[0].mxu0
    %253 = vmatprep.mubr.bf16.mxu0 0
    %254 = vmatmul.mubr.bf16.gmra.mrb[0].mxu0 %v193
    %v255 = vpop.f32.mrb[0].mxu0
    %v256 = vadd.f32 %v75, %v255
    %v257 = vpop.f32.mrb[0].mxu0
    %v258 = vpop.f32.mrb[0].mxu0
    %v259 = vadd.f32 %v80, %v258
    %v260 = vpop.f32.mrb[0].mxu0
    %261 = vmatprep.mubr.bf16.mxu0 0
    %262 = vmatmul.mubr.bf16.gmra.mrb[0].mxu0 %v196
    %v263 = vpop.f32.mrb[0].mxu0
    %v264 = vadd.f32 %v85, %v263
    %v265 = vpop.f32.mrb[0].mxu0
    %v266 = vpop.f32.mrb[0].mxu0
    %v267 = vadd.f32 %v90, %v266
    %v268 = vpop.f32.mrb[0].mxu0
    %269 = vmatprep.mubr.bf16.mxu0 0
    %270 = vmatmul.mubr.bf16.gmra.mrb[0].mxu0 %v199
    %v271 = vpop.f32.mrb[0].mxu0
    %v272 = vadd.f32 %v95, %v271
    %v273 = vpop.f32.mrb[0].mxu0
    %v274 = vpop.f32.mrb[0].mxu0
    %v275 = vadd.f32 %v100, %v274
    %v276 = vpop.f32.mrb[0].mxu0
    %277 = vmatprep.mubr.bf16.mxu0 0
    %278 = vmatmul.mubr.bf16.gmra.mrb[0].mxu0 %v202
    %v279 = vpop.f32.mrb[0].mxu0
    %v280 = vadd.f32 %v105, %v279
    %v281 = vpop.f32.mrb[0].mxu0
    %v282 = vpop.f32.mrb[0].mxu0
    %v283 = vadd.f32 %v110, %v282
    %v284 = vpop.f32.mrb[0].mxu0
    %285 = vmatprep.mubr.bf16.mxu0 0
    %286 = vmatmul.mubr.bf16.gmra.mrb[0].mxu0 %v205
    %v287 = vpop.f32.mrb[0].mxu0
    %v288 = vadd.f32 %v115, %v287
    %v289 = vpop.f32.mrb[0].mxu0
    %v290 = vpop.f32.mrb[0].mxu0
    %v291 = vadd.f32 %v120, %v290
    %v292 = vpop.f32.mrb[0].mxu0
    %293 = vmatprep.mubr.bf16.mxu0 0
    %294 = vmatmul.mubr.bf16.gmra.mrb[0].mxu0 %v208
    %v295 = vpop.f32.mrb[0].mxu0
    %v296 = vadd.f32 %v125, %v295
    %v297 = vpop.f32.mrb[0].mxu0
    %v298 = vpop.f32.mrb[0].mxu0
    %v299 = vadd.f32 %v130, %v298
    %v300 = vpop.f32.mrb[0].mxu0
    %301 = vmatprep.mubr.bf16.mxu0 0
    %302 = vmatmul.mubr.bf16.gmra.mrb[0].mxu0 %v211
    %v303 = vpop.f32.mrb[0].mxu0
    %v304 = vadd.f32 %v135, %v303
    %v305 = vpop.f32.mrb[0].mxu0
    %v306 = vpop.f32.mrb[0].mxu0
    %v307 = vadd.f32 %v140, %v306
    %v308 = vpop.f32.mrb[0].mxu0
    %309 = vdwg.mxu0
    %v310 = vmax.f32 %v248, 0.0
    %v311 = vmax.f32 %v251, 0.0
    %v312 = vmax.f32 %v256, 0.0
    %v313 = vmax.f32 %v259, 0.0
    %v314 = vmax.f32 %v264, 0.0
    %v315 = vmax.f32 %v267, 0.0
    %v316 = vmax.f32 %v272, 0.0
    %v317 = vmax.f32 %v275, 0.0
    %v318 = vmax.f32 %v280, 0.0
    %v319 = vmax.f32 %v283, 0.0
    %v320 = vmax.f32 %v288, 0.0
    %v321 = vmax.f32 %v291, 0.0
    %v322 = vmax.f32 %v296, 0.0
    %v323 = vmax.f32 %v299, 0.0
    %v324 = vmax.f32 %v304, 0.0
    %v325 = vmax.f32 %v307, 0.0
    %v326 = vpack.c.bf16 %v311, %v310
    %v327 = vpack.c.bf16 %v313, %v312
    %v328 = vpack.c.bf16 %v315, %v314
    %v329 = vpack.c.bf16 %v317, %v316
    %v330 = vpack.c.bf16 %v319, %v318
    %v331 = vpack.c.bf16 %v321, %v320
    %v332 = vpack.c.bf16 %v323, %v322
    %v333 = vpack.c.bf16 %v325, %v324
    %v334 = vld [vmem:[%s3] sm:$0xf]
    %v335 = vld [vmem:[%s3 + $0x4] sm:$0xf]
    %v336 = vld [vmem:[%s3 + $0x8] sm:$0xf]
    %v337 = vld [vmem:[%s3 + $0xc] sm:$0xf]
    %v338 = vld [vmem:[%s3 + $0x10] sm:$0xf]
    %v339 = vld [vmem:[%s3 + $0x14] sm:$0xf]
    %v340 = vld [vmem:[%s3 + $0x18] sm:$0xf]
    %v341 = vld [vmem:[%s3 + $0x1c] sm:$0xf]
    %v342 = vld [vmem:[%s4] sm:$0xff]
    %v343 = vld [vmem:[%s4 + $0x8] sm:$0xff]
    %v344 = vld [vmem:[%s4 + $0x10] sm:$0xff]
    %v345 = vld [vmem:[%s4 + $0x18] sm:$0xff]
    %v346 = vld [vmem:[%s4 + $0x20] sm:$0xff]
    %v347 = vld [vmem:[%s4 + $0x28] sm:$0xff]
    %v348 = vld [vmem:[%s4 + $0x30] sm:$0xff]
    %v349 = vld [vmem:[%s4 + $0x38] sm:$0xff]
    %351 = vset.pattern.permute.xlu0 0
    %352 = vperm.xlu0 %351, %v342
    %v353 = vpop.permute.xlu0 %352
    %356 = vset.pattern.permute.xlu0 0
    %357 = vperm.xlu0 %356, %v343
    %v358 = vpop.permute.xlu0 %357
    %361 = vset.pattern.permute.xlu0 0
    %362 = vperm.xlu0 %361, %v344
    %v363 = vpop.permute.xlu0 %362
    %366 = vset.pattern.permute.xlu0 0
    %367 = vperm.xlu0 %366, %v345
    %v368 = vpop.permute.xlu0 %367
    %371 = vset.pattern.permute.xlu0 0
    %372 = vperm.xlu0 %371, %v346
    %v373 = vpop.permute.xlu0 %372
    %376 = vset.pattern.permute.xlu0 0
    %377 = vperm.xlu0 %376, %v347
    %v378 = vpop.permute.xlu0 %377
    %381 = vset.pattern.permute.xlu0 0
    %382 = vperm.xlu0 %381, %v348
    %v383 = vpop.permute.xlu0 %382
    %386 = vset.pattern.permute.xlu0 0
    %387 = vperm.xlu0 %386, %v349
    %v388 = vpop.permute.xlu0 %387
    %v398 = vunpack.c.l.b16 %v334
    %v399 = vunpack.c.l.b16 %v335
    %v400 = vunpack.c.l.b16 %v336
    %v401 = vunpack.c.l.b16 %v337
    %v402 = vunpack.c.l.b16 %v338
    %v403 = vunpack.c.l.b16 %v339
    %v404 = vunpack.c.l.b16 %v340
    %v405 = vunpack.c.l.b16 %v341
    %v406 = vpack.c.b16 %v399, %v398
    %v407 = vpack.c.b16 %v401, %v400
    %v408 = vpack.c.b16 %v403, %v402
    %v409 = vpack.c.b16 %v405, %v404
    %414 = vmatprep.subr.bf16.mxu0 0
    %415 = vmatpush1.bf16.msra.mxu0 %v326
    %416 = vmatprep.subr.bf16.mxu0 0
    %417 = vmatpush1.bf16.msra.mxu0 %v327
    %418 = vmatprep.subr.bf16.mxu0 0
    %419 = vmatpush1.bf16.msra.mxu0 %v328
    %420 = vmatprep.subr.bf16.mxu0 0
    %421 = vmatpush1.bf16.msra.mxu0 %v329
    %422 = vmatprep.subr.bf16.mxu0 0
    %423 = vmatpush1.bf16.msra.mxu0 %v330
    %424 = vmatprep.subr.bf16.mxu0 0
    %425 = vmatpush1.bf16.msra.mxu0 %v331
    %426 = vmatprep.subr.bf16.mxu0 0
    %427 = vmatpush1.bf16.msra.mxu0 %v332
    %428 = vmatprep.subr.bf16.mxu0 0
    %429 = vmatpush1.bf16.msra.mxu0 %v333
    %430 = vmatprep.subr.bf16.mxu0 0
    %431 = vmatpush1.bf16.msra.mxu0 0
    %432 = vmatprep.subr.bf16.mxu0 0
    %433 = vmatpush1.bf16.msra.mxu0 0
    %434 = vmatprep.subr.bf16.mxu0 0
    %435 = vmatpush1.bf16.msra.mxu0 0
    %436 = vmatprep.subr.bf16.mxu0 0
    %437 = vmatpush1.bf16.msra.mxu0 0
    %438 = vmatprep.subr.bf16.mxu0 0
    %439 = vmatpush1.bf16.msra.mxu0 0
    %440 = vmatprep.subr.bf16.mxu0 0
    %441 = vmatpush1.bf16.msra.mxu0 0
    %442 = vmatprep.subr.bf16.mxu0 0
    %443 = vmatpush1.bf16.msra.mxu0 0
    %444 = vmatprep.subr.bf16.mxu0 0
    %445 = vmatpush1.bf16.msra.mxu0 0
    %446 = vmatprep.mubr.bf16.mxu0 0
    %447 = vmatmul.mubr.bf16.gmra.mrb[0].mxu0 %v406
    %v448 = vpop.f32.mrb[0].mxu0
    %v449 = vadd.f32 %v353, %v448
    %v450 = vpop.f32.mrb[0].mxu0
    %v451 = vpop.f32.mrb[0].mxu0
    %v452 = vadd.f32 %v358, %v451
    %v453 = vpop.f32.mrb[0].mxu0
    %454 = vmatprep.mubr.bf16.mxu0 0
    %455 = vmatmul.mubr.bf16.gmra.mrb[0].mxu0 %v407
    %v456 = vpop.f32.mrb[0].mxu0
    %v457 = vadd.f32 %v363, %v456
    %v458 = vpop.f32.mrb[0].mxu0
    %v459 = vpop.f32.mrb[0].mxu0
    %v460 = vadd.f32 %v368, %v459
    %v461 = vpop.f32.mrb[0].mxu0
    %462 = vmatprep.mubr.bf16.mxu0 0
    %463 = vmatmul.mubr.bf16.gmra.mrb[0].mxu0 %v408
    %v464 = vpop.f32.mrb[0].mxu0
    %v465 = vadd.f32 %v373, %v464
    %v466 = vpop.f32.mrb[0].mxu0
    %v467 = vpop.f32.mrb[0].mxu0
    %v468 = vadd.f32 %v378, %v467
    %v469 = vpop.f32.mrb[0].mxu0
    %470 = vmatprep.mubr.bf16.mxu0 0
    %471 = vmatmul.mubr.bf16.gmra.mrb[0].mxu0 %v409
    %v472 = vpop.f32.mrb[0].mxu0
    %v473 = vadd.f32 %v383, %v472
    %v474 = vpop.f32.mrb[0].mxu0
    %v475 = vpop.f32.mrb[0].mxu0
    %v476 = vadd.f32 %v388, %v475
    %v477 = vpop.f32.mrb[0].mxu0
    %478 = vdwg.mxu0
    %v479 = vmax.f32 %v449, 0.0
    %v480 = vmax.f32 %v452, 0.0
    %v481 = vmax.f32 %v457, 0.0
    %v482 = vmax.f32 %v460, 0.0
    %v483 = vmax.f32 %v465, 0.0
    %v484 = vmax.f32 %v468, 0.0
    %v485 = vmax.f32 %v473, 0.0
    %v486 = vmax.f32 %v476, 0.0
    %v487 = vpack.c.bf16 %v480, %v479
    %v488 = vpack.c.bf16 %v482, %v481
    %v489 = vpack.c.bf16 %v484, %v483
    %v490 = vpack.c.bf16 %v486, %v485
    %v491 = vld [vmem:[%s5] sm:$0xf]
    %v492 = vld [vmem:[%s6] sm:$0xff]
    %494 = vset.pattern.permute.xlu0 0
    %495 = vperm.xlu0 %494, %v492
    %v496 = vpop.permute.xlu0 %495
    %vm498 = vcmask 523264
    %v500 = vsel %vm498, %v491, 0
    %502 = vmatprep.subr.bf16.mxu0 0
    %503 = vmatpush1.bf16.msra.mxu0 %v487
    %504 = vmatprep.subr.bf16.mxu0 0
    %505 = vmatpush1.bf16.msra.mxu0 %v488
    %506 = vmatprep.subr.bf16.mxu0 0
    %507 = vmatpush1.bf16.msra.mxu0 %v489
    %508 = vmatprep.subr.bf16.mxu0 0
    %509 = vmatpush1.bf16.msra.mxu0 %v490
    %510 = vmatprep.subr.bf16.mxu0 0
    %511 = vmatpush1.bf16.msra.mxu0 0
    %512 = vmatprep.subr.bf16.mxu0 0
    %513 = vmatpush1.bf16.msra.mxu0 0
    %514 = vmatprep.subr.bf16.mxu0 0
    %515 = vmatpush1.bf16.msra.mxu0 0
    %516 = vmatprep.subr.bf16.mxu0 0
    %517 = vmatpush1.bf16.msra.mxu0 0
    %518 = vmatprep.subr.bf16.mxu0 0
    %519 = vmatpush1.bf16.msra.mxu0 0
    %520 = vmatprep.subr.bf16.mxu0 0
    %521 = vmatpush1.bf16.msra.mxu0 0
    %522 = vmatprep.subr.bf16.mxu0 0
    %523 = vmatpush1.bf16.msra.mxu0 0
    %524 = vmatprep.subr.bf16.mxu0 0
    %525 = vmatpush1.bf16.msra.mxu0 0
    %526 = vmatprep.subr.bf16.mxu0 0
    %527 = vmatpush1.bf16.msra.mxu0 0
    %528 = vmatprep.subr.bf16.mxu0 0
    %529 = vmatpush1.bf16.msra.mxu0 0
    %530 = vmatprep.subr.bf16.mxu0 0
    %531 = vmatpush1.bf16.msra.mxu0 0
    %532 = vmatprep.subr.bf16.mxu0 0
    %533 = vmatpush1.bf16.msra.mxu0 0
    %534 = vmatprep.mubr.bf16.mxu0 0
    %535 = vmatmul.mubr.bf16.gmra.mrb[0].mxu0 %v500
    %v536 = vpop.f32.mrb[0].mxu0
    %v537 = vadd.f32 %v496, %v536
    %v538 = vpop.f32.mrb[0].mxu0
    %v539 = vpop.f32.mrb[0].mxu0
    %v540 = vpop.f32.mrb[0].mxu0
    %541 = vdwg.mxu0
    %542 = vst [vmem:[#allocation2] sm:$0xff] %v537
    // Predicated region
    $region30: #{tpu_custom_call.1} parent=1 // pred_check
      _
    $region31: #{tpu_custom_call.1} parent=1 // pred_check_branch
      %544 = sbr.rel (0) target = $region33
    $region32: #{tpu_custom_call.1} parent=1 // pred_region
      %s546 = ssub.s32 128, 128
      %547 = vsyncadd [#allocation3], %s546
      %s549 = sshll.u32 [#allocation2], 4
      %s550 = int_to_ptr.vmem [resolvable:$true] %s549
      %552 = dma.vmem_to_hbm [thread:$0]  %s550, 128, %s7, [#allocation3]
    $region33: #{tpu_custom_call.1} parent=1 // pred_fallthru
      _
    // Predicated region
    $region34: #{tpu_custom_call.1} parent=1 // pred_check
      _
    $region35: #{tpu_custom_call.1} parent=1 // pred_check_branch
      %554 = sbr.rel (0) target = $region37
    $region36: #{tpu_custom_call.1} parent=1 // pred_region
      %555 = dma.done [#allocation3], 128
    $region37: #{tpu_custom_call.1} parent=1 // pred_fallthru
      _
    %556 = vsyncpa [#allocation3], 1

</llo_original>
